<compile_context>
chip_gen: v6e
topology: v6e:2x2x1
jax: 0.10.0
libtpu: 0.0.40
codegen_flags: <defaults>
</compile_context>

<pallas_src>
import functools

import jax
import jax.numpy as jnp
from jax.experimental import pallas as pl
from jax.experimental.pallas import tpu as pltpu


def _soft_align_kernel(fqp_ref, fppt_ref, fp_ref, out_ref, m_sc, l_sc, *, use_bf16):
    # fqp_ref : (1, Ch, tq)  projected query tile (Ch = C // 2), channel-major
    # fppt_ref: (1, tk, Ch)  projected key tile, pre-transposed (keys on sublanes)
    # fp_ref  : (1, C, tk)   original value tile, channel-major
    # out_ref : (1, C, tq)   output tile; doubles as the f32 flash accumulator
    # m_sc    : (1, tq)      running max
    # l_sc    : (1, tq)      running denominator
    ki = pl.program_id(2)

    @pl.when(ki == 0)
    def _():
        m_sc[...] = jnp.full_like(m_sc, -jnp.inf)
        l_sc[...] = jnp.zeros_like(l_sc)
        out_ref[...] = jnp.zeros_like(out_ref)

    qp = fqp_ref[0]        # (Ch, tq)
    kpt = fppt_ref[0]      # (tk, Ch)
    v = fp_ref[0]          # (C, tk)

    if use_bf16:
        qp_m = qp.astype(jnp.bfloat16)
        kpt_m = kpt.astype(jnp.bfloat16)
    else:
        qp_m, kpt_m = qp, kpt

    # s[j, i] = sum_c Fp_p[c, j] * Fq_p[c, i]  -> (tk, tq).
    # Natural MXU form: lhs contracts its last dim, rhs its first -> no transposes.
    s = jnp.dot(kpt_m, qp_m, preferred_element_type=jnp.float32)        # (tk, tq)

    m_prev = m_sc[...]                                                   # (1, tq)
    m_new = jnp.maximum(m_prev, jnp.max(s, axis=0, keepdims=True))       # (1, tq)
    alpha = jnp.exp(m_prev - m_new)                                      # (1, tq)
    p = jnp.exp(s - m_new)                                               # (tk, tq)

    l_sc[...] = alpha * l_sc[...] + jnp.sum(p, axis=0, keepdims=True)
    m_sc[...] = m_new

    if use_bf16:
        pv = jnp.dot(v.astype(jnp.bfloat16), p.astype(jnp.bfloat16),
                     preferred_element_type=jnp.float32)                 # (C, tq)
    else:
        pv = jnp.dot(v, p, preferred_element_type=jnp.float32)           # (C, tq)

    # out[c, i] += sum_j Fp[c, j] * p[j, i]; accumulate directly in the resident output.
    out_ref[0] = alpha * out_ref[0] + pv

    @pl.when(ki == pl.num_programs(2) - 1)
    def _():
        l = l_sc[...]
        inv_l = pl.reciprocal(l, approx=True)      # EUP slot; cold (finalize) path
        inv_l = inv_l * (2.0 - l * inv_l)          # one Newton step -> full f32 accuracy
        out_ref[0] = out_ref[0] * inv_l


def _choose_block(hw, requested):
    """Pick a tile size: full extent, or the largest 128-multiple <= requested dividing hw."""
    blk = min(requested, hw)
    if blk == hw:
        return hw
    blk = (blk // 128) * 128
    while blk >= 128 and hw % blk != 0:
        blk -= 128
    # TODO(synk): pad/mask a tail tile instead of falling back to a single full-HW tile
    # when HW is not a multiple of 128 (e.g. 50x50 spatial) -> bounds VMEM for odd sizes.
    return blk if blk >= 128 else hw


def _vmem_estimate_bytes(c, c_half, tq, tk, itemsize=4):
    pad_lane = lambda n: -(-n // 128) * 128
    pad_sub = lambda n: -(-n // 8) * 8
    dbl_inputs = 2 * itemsize * (pad_sub(c_half) * pad_lane(tq)     # Fq_p tile (x2 buffers)
                                 + pad_sub(tk) * pad_lane(c_half)   # Fp_p^T tile
                                 + pad_sub(c) * pad_lane(tk))       # Fp values tile
    out = 2 * itemsize * pad_sub(c) * pad_lane(tq)                  # resident output/acc
    scratch = 2 * itemsize * pad_sub(1) * pad_lane(tq)              # m / l
    temps = 4 * itemsize * pad_sub(tk) * pad_lane(tq)               # s / p / exp temporaries
    return dbl_inputs + out + scratch + temps


def soft_alignment_pallas(fq, fp, weight, bias, *, block_q=1024, block_k=512,
                          use_bf16_mxu=True):
    """fq, fp: (B, C, H, W). weight: (C//2, C). bias: (C//2,).
    Returns aligned Fp of shape (B, C, H, W)."""
    b, c, h, w = fq.shape
    hw = h * w
    c_half = weight.shape[0]

    tq = _choose_block(hw, block_q)
    tk = _choose_block(hw, block_k)

    fq_flat = fq.reshape(b, c, hw).astype(jnp.float32)
    fp_flat = fp.reshape(b, c, hw).astype(jnp.float32)
    w32 = weight.astype(jnp.float32)
    b32 = bias.astype(jnp.float32)

    # 1x1-conv projections hoisted to one-time XLA GEMMs (no per-q-tile re-projection of
    # Fp inside the kernel). Fp_p is produced pre-transposed so the in-kernel scores
    # matmul needs no XLU transpose.
    fq_p = jnp.einsum('oc,bcs->bos', w32, fq_flat) + b32[None, :, None]      # (B, C/2, HW)
    fp_p_t = jnp.einsum('oc,bcs->bso', w32, fp_flat) + b32[None, None, :]    # (B, HW, C/2)

    grid = (b, hw // tq, hw // tk)

    vmem_limit = int(min(64 * 2 ** 20,
                         max(32 * 2 ** 20,
                             2 * _vmem_estimate_bytes(c, c_half, tq, tk))))

    kernel = functools.partial(_soft_align_kernel, use_bf16=use_bf16_mxu)

    out = pl.pallas_call(
        kernel,
        out_shape=jax.ShapeDtypeStruct((b, c, hw), jnp.float32),
        grid_spec=pltpu.PrefetchScalarGridSpec(
            num_scalar_prefetch=0,
            grid=grid,
            in_specs=[
                pl.BlockSpec((1, c_half, tq), lambda bi, qi, ki: (bi, 0, qi)),  # Fq_p tile
                pl.BlockSpec((1, tk, c_half), lambda bi, qi, ki: (bi, ki, 0)),  # Fp_p^T tile
                pl.BlockSpec((1, c, tk), lambda bi, qi, ki: (bi, 0, ki)),       # Fp value tile
            ],
            out_specs=pl.BlockSpec((1, c, tq), lambda bi, qi, ki: (bi, 0, qi)),
            scratch_shapes=[
                pltpu.VMEM((1, tq), jnp.float32),   # running max
                pltpu.VMEM((1, tq), jnp.float32),   # running denominator
            ],
        ),
        compiler_params=pltpu.CompilerParams(
            dimension_semantics=("parallel", "parallel", "arbitrary"),
            vmem_limit_bytes=vmem_limit),
    )(fq_p, fp_p_t, fp_flat)

    # Output is already (B, C, HW) channel-major (lane axis = 128-aligned spatial dim):
    # just reshape, no transpose pass.
    return out.reshape(b, c, h, w).astype(fq.dtype)


def soft_alignment_ref(fq, fp, weight, bias):
    """Pure-JAX reference matching the PyTorch forward."""
    b, c, h, w = fq.shape
    hw = h * w
    fq_p = jnp.einsum('oc,bcs->bos', weight, fq.reshape(b, c, hw)) + bias[None, :, None]
    fp_p = jnp.einsum('oc,bcs->bos', weight, fp.reshape(b, c, hw)) + bias[None, :, None]
    sim = jnp.einsum('bci,bcj->bij', fq_p, fp_p)
    attn = jax.nn.softmax(sim, axis=-1)
    aligned = jnp.einsum('bij,bcj->bci', attn, fp.reshape(b, c, hw))  # (B, C, HW)
    return aligned.reshape(b, c, h, w)


if __name__ == "__main__":
    B, C, H, W = 2, 4, 16, 16
    key = jax.random.PRNGKey(0)
    k1, k2, k3, k4 = jax.random.split(key, 4)

    fq = jax.random.normal(k1, (B, C, H, W), dtype=jnp.float32)
    fp = jax.random.normal(k2, (B, C, H, W), dtype=jnp.float32)

    # Deterministic parameter init for nn.Conv2d(C, C//2, kernel_size=1):
    # weight (C//2, C, 1, 1) -> stored here as (C//2, C); bias (C//2,)
    fan_in = C
    bound = 1.0 / (fan_in ** 0.5)
    weight = jax.random.uniform(k3, (C // 2, C), jnp.float32, -bound, bound)
    bias = jax.random.uniform(k4, (C // 2,), jnp.float32, -bound, bound)

    ref = soft_alignment_ref(fq, fp, weight, bias)

    # block_q/block_k = 128 so the small test (HW = 256) exercises the multi-tile flash
    # accumulation path: grid = (2, 2, 2).
    out_bf16 = soft_alignment_pallas(fq, fp, weight, bias, block_q=128, block_k=128,
                                     use_bf16_mxu=True)
    out_bf16 = jax.block_until_ready(out_bf16)
    assert out_bf16.shape == (B, C, H, W)
    assert jnp.allclose(out_bf16, ref, atol=3e-2, rtol=3e-2), "bf16-MXU path mismatch"

    # Strict-f32 MXU path keeps the original 1e-4 tolerance.
    out_f32 = soft_alignment_pallas(fq, fp, weight, bias, block_q=128, block_k=128,
                                    use_bf16_mxu=False)
    out_f32 = jax.block_until_ready(out_f32)
    assert jnp.allclose(out_f32, ref, atol=1e-4, rtol=1e-4), "f32 path mismatch"

    print("KERNEL_OK")
</pallas_src>

<mosaic_0001>
module attributes {stable_mosaic.version = 11 : i64} {
  func.func @_soft_align_kernel(%arg0: i32, %arg1: i32, %arg2: i32, %arg3: memref<1x2x128xf32, #tpu.memory_space<vmem>>, %arg4: memref<1x128x2xf32, #tpu.memory_space<vmem>>, %arg5: memref<1x4x128xf32, #tpu.memory_space<vmem>>, %arg6: memref<1x4x128xf32, #tpu.memory_space<vmem>>, %arg7: memref<1x128xf32, #tpu.memory_space<vmem>>, %arg8: memref<1x128xf32, #tpu.memory_space<vmem>>) attributes {dimension_semantics = [#tpu.dimension_semantics<parallel>, #tpu.dimension_semantics<parallel>, #tpu.dimension_semantics<arbitrary>], iteration_bounds = array<i64: 2, 2, 2>, scalar_prefetch = 0 : i64, scratch_operands = 2 : i64, tpu.core_type = #tpu.core_type<tc>, window_params = [{transform_indices = @transform_0, window_bounds = array<i64: 1, 2, 128>}, {transform_indices = @transform_1, window_bounds = array<i64: 1, 128, 2>}, {transform_indices = @transform_2, window_bounds = array<i64: 1, 4, 128>}, {transform_indices = @transform_3, window_bounds = array<i64: 1, 4, 128>}]} {
    %c0_i32 = arith.constant 0 : i32
    %0 = arith.cmpi eq, %arg2, %c0_i32 : i32
    %1 = arith.extui %0 : i1 to i32
    %c0_i32_0 = arith.constant 0 : i32
    %2 = arith.cmpi ne, %1, %c0_i32_0 : i32
    scf.if %2 {
      %cst_27 = arith.constant 0xFF800000 : f32
      %42 = vector.broadcast %cst_27 : f32 to vector<1x128xf32>
      %c0_28 = arith.constant 0 : index
      %c0_29 = arith.constant 0 : index
      %43 = vector.load %arg7[%c0_28, %c0_29] : memref<1x128xf32, #tpu.memory_space<vmem>>, vector<1x128xf32>
      tpu.vector_store %arg7[%c0_28, %c0_29], %42 {strides = array<i32>} : memref<1x128xf32, #tpu.memory_space<vmem>>, vector<1x128xf32>,
      %cst_30 = arith.constant 0.000000e+00 : f32
      %44 = vector.broadcast %cst_30 : f32 to vector<1x128xf32>
      %c0_31 = arith.constant 0 : index
      %c0_32 = arith.constant 0 : index
      %45 = vector.load %arg8[%c0_31, %c0_32] : memref<1x128xf32, #tpu.memory_space<vmem>>, vector<1x128xf32>
      tpu.vector_store %arg8[%c0_31, %c0_32], %44 {strides = array<i32>} : memref<1x128xf32, #tpu.memory_space<vmem>>, vector<1x128xf32>,
      %cst_33 = arith.constant 0.000000e+00 : f32
      %46 = vector.broadcast %cst_33 : f32 to vector<1x4x128xf32>
      %c0_34 = arith.constant 0 : index
      %c0_35 = arith.constant 0 : index
      %c0_36 = arith.constant 0 : index
      %47 = vector.load %arg6[%c0_34, %c0_35, %c0_36] : memref<1x4x128xf32, #tpu.memory_space<vmem>>, vector<1x4x128xf32>
      tpu.vector_store %arg6[%c0_34, %c0_35, %c0_36], %46 {strides = array<i32>} : memref<1x4x128xf32, #tpu.memory_space<vmem>>, vector<1x4x128xf32>,
    } else {
    }
    %c0 = arith.constant 0 : index
    %c0_1 = arith.constant 0 : index
    %c0_2 = arith.constant 0 : index
    %3 = vector.load %arg3[%c0, %c0_1, %c0_2] : memref<1x2x128xf32, #tpu.memory_space<vmem>>, vector<1x2x128xf32>
    %4 = vector.shape_cast %3 : vector<1x2x128xf32> to vector<2x128xf32>
    %c0_3 = arith.constant 0 : index
    %c0_4 = arith.constant 0 : index
    %c0_5 = arith.constant 0 : index
    %5 = vector.load %arg4[%c0_3, %c0_4, %c0_5] : memref<1x128x2xf32, #tpu.memory_space<vmem>>, vector<1x128x2xf32>
    %6 = vector.shape_cast %5 : vector<1x128x2xf32> to vector<128x2xf32>
    %c0_6 = arith.constant 0 : index
    %c0_7 = arith.constant 0 : index
    %c0_8 = arith.constant 0 : index
    %7 = vector.load %arg5[%c0_6, %c0_7, %c0_8] : memref<1x4x128xf32, #tpu.memory_space<vmem>>, vector<1x4x128xf32>
    %8 = vector.shape_cast %7 : vector<1x4x128xf32> to vector<4x128xf32>
    %9 = arith.truncf %4 : vector<2x128xf32> to vector<2x128xbf16>
    %10 = arith.truncf %6 : vector<128x2xf32> to vector<128x2xbf16>
    %cst = arith.constant dense<0.000000e+00> : vector<128x128xf32>
    %11 = tpu.matmul %10, %9, %cst {dimension_numbers = #tpu.dot_dimension_numbers<[1], [0], [0], [1], [0, 0, 1, 1], [], []>} : vector<128x2xbf16>, vector<2x128xbf16>, vector<128x128xf32> -> vector<128x128xf32>
    %c0_9 = arith.constant 0 : index
    %c0_10 = arith.constant 0 : index
    %12 = vector.load %arg7[%c0_9, %c0_10] : memref<1x128xf32, #tpu.memory_space<vmem>>, vector<1x128xf32>
    %cst_11 = arith.constant dense<0xFF800000> : vector<128xf32>
    %13 = vector.multi_reduction <maximumf>, %11, %cst_11 [0] : vector<128x128xf32> to vector<128xf32>
    %14 = vector.shape_cast %13 : vector<128xf32> to vector<1x128xf32>
    %15 = arith.maximumf %12, %14 : vector<1x128xf32>
    %16 = arith.subf %12, %15 : vector<1x128xf32>
    %17 = math.exp %16 : vector<1x128xf32>
    %18 = vector.broadcast %15 : vector<1x128xf32> to vector<128x128xf32>
    %19 = arith.subf %11, %18 : vector<128x128xf32>
    %20 = math.exp %19 : vector<128x128xf32>
    %c0_12 = arith.constant 0 : index
    %c0_13 = arith.constant 0 : index
    %21 = vector.load %arg8[%c0_12, %c0_13] : memref<1x128xf32, #tpu.memory_space<vmem>>, vector<1x128xf32>
    %22 = arith.mulf %17, %21 : vector<1x128xf32>
    %cst_14 = arith.constant dense<0.000000e+00> : vector<128xf32>
    %23 = vector.multi_reduction <add>, %20, %cst_14 [0] : vector<128x128xf32> to vector<128xf32>
    %24 = vector.shape_cast %23 : vector<128xf32> to vector<1x128xf32>
    %25 = arith.addf %22, %24 : vector<1x128xf32>
    %c0_15 = arith.constant 0 : index
    %c0_16 = arith.constant 0 : index
    %26 = vector.load %arg8[%c0_15, %c0_16] : memref<1x128xf32, #tpu.memory_space<vmem>>, vector<1x128xf32>
    tpu.vector_store %arg8[%c0_15, %c0_16], %25 {strides = array<i32>} : memref<1x128xf32, #tpu.memory_space<vmem>>, vector<1x128xf32>,
    %c0_17 = arith.constant 0 : index
    %c0_18 = arith.constant 0 : index
    %27 = vector.load %arg7[%c0_17, %c0_18] : memref<1x128xf32, #tpu.memory_space<vmem>>, vector<1x128xf32>
    tpu.vector_store %arg7[%c0_17, %c0_18], %15 {strides = array<i32>} : memref<1x128xf32, #tpu.memory_space<vmem>>, vector<1x128xf32>,
    %28 = arith.truncf %8 : vector<4x128xf32> to vector<4x128xbf16>
    %29 = arith.truncf %20 : vector<128x128xf32> to vector<128x128xbf16>
    %cst_19 = arith.constant dense<0.000000e+00> : vector<4x128xf32>
    %30 = tpu.matmul %28, %29, %cst_19 {dimension_numbers = #tpu.dot_dimension_numbers<[1], [0], [0], [1], [0, 0, 1, 1], [], []>} : vector<4x128xbf16>, vector<128x128xbf16>, vector<4x128xf32> -> vector<4x128xf32>
    %c0_20 = arith.constant 0 : index
    %c0_21 = arith.constant 0 : index
    %c0_22 = arith.constant 0 : index
    %31 = vector.load %arg6[%c0_20, %c0_21, %c0_22] : memref<1x4x128xf32, #tpu.memory_space<vmem>>, vector<1x4x128xf32>
    %32 = vector.shape_cast %31 : vector<1x4x128xf32> to vector<4x128xf32>
    %33 = vector.broadcast %17 : vector<1x128xf32> to vector<4x128xf32>
    %34 = arith.mulf %33, %32 : vector<4x128xf32>
    %35 = arith.addf %34, %30 : vector<4x128xf32>
    %c0_23 = arith.constant 0 : index
    %c0_24 = arith.constant 0 : index
    %c0_25 = arith.constant 0 : index
    %36 = vector.load %arg6[%c0_23, %c0_24, %c0_25] : memref<1x4x128xf32, #tpu.memory_space<vmem>>, vector<1x4x128xf32>
    %37 = vector.shape_cast %36 : vector<1x4x128xf32> to vector<4x128xf32>
    %38 = vector.shape_cast %35 : vector<4x128xf32> to vector<1x4x128xf32>
    tpu.vector_store %arg6[%c0_23, %c0_24, %c0_25], %38 {strides = array<i32>} : memref<1x4x128xf32, #tpu.memory_space<vmem>>, vector<1x4x128xf32>,
    %c1_i32 = arith.constant 1 : i32
    %39 = arith.cmpi eq, %arg2, %c1_i32 : i32
    %40 = arith.extui %39 : i1 to i32
    %c0_i32_26 = arith.constant 0 : i32
    %41 = arith.cmpi ne, %40, %c0_i32_26 : i32
    scf.if %41 {
      %c0_27 = arith.constant 0 : index
      %c0_28 = arith.constant 0 : index
      %42 = vector.load %arg8[%c0_27, %c0_28] : memref<1x128xf32, #tpu.memory_space<vmem>>, vector<1x128xf32>
      %43 = tpu.reciprocal %42 {approx = true} : vector<1x128xf32> -> vector<1x128xf32>
      %44 = arith.mulf %42, %43 : vector<1x128xf32>
      %cst_29 = arith.constant 2.000000e+00 : f32
      %45 = vector.broadcast %cst_29 : f32 to vector<1x128xf32>
      %46 = arith.subf %45, %44 : vector<1x128xf32>
      %47 = arith.mulf %43, %46 : vector<1x128xf32>
      %c0_30 = arith.constant 0 : index
      %c0_31 = arith.constant 0 : index
      %c0_32 = arith.constant 0 : index
      %48 = vector.load %arg6[%c0_30, %c0_31, %c0_32] : memref<1x4x128xf32, #tpu.memory_space<vmem>>, vector<1x4x128xf32>
      %49 = vector.shape_cast %48 : vector<1x4x128xf32> to vector<4x128xf32>
      %50 = vector.broadcast %47 : vector<1x128xf32> to vector<4x128xf32>
      %51 = arith.mulf %49, %50 : vector<4x128xf32>
      %c0_33 = arith.constant 0 : index
      %c0_34 = arith.constant 0 : index
      %c0_35 = arith.constant 0 : index
      %52 = vector.load %arg6[%c0_33, %c0_34, %c0_35] : memref<1x4x128xf32, #tpu.memory_space<vmem>>, vector<1x4x128xf32>
      %53 = vector.shape_cast %52 : vector<1x4x128xf32> to vector<4x128xf32>
      %54 = vector.shape_cast %51 : vector<4x128xf32> to vector<1x4x128xf32>
      tpu.vector_store %arg6[%c0_33, %c0_34, %c0_35], %54 {strides = array<i32>} : memref<1x4x128xf32, #tpu.memory_space<vmem>>, vector<1x4x128xf32>,
    } else {
    }
    return
  }
  func.func @transform_0(%arg0: i32, %arg1: i32, %arg2: i32) -> (i32, i32, i32) {
    %c0_i32 = arith.constant 0 : i32
    %c0_i32_0 = arith.constant 0 : i32
    return %arg0, %c0_i32, %arg1 : i32, i32, i32
  }
  func.func @transform_1(%arg0: i32, %arg1: i32, %arg2: i32) -> (i32, i32, i32) {
    %c0_i32 = arith.constant 0 : i32
    %c0_i32_0 = arith.constant 0 : i32
    return %arg0, %arg2, %c0_i32 : i32, i32, i32
  }
  func.func @transform_2(%arg0: i32, %arg1: i32, %arg2: i32) -> (i32, i32, i32) {
    %c0_i32 = arith.constant 0 : i32
    %c0_i32_0 = arith.constant 0 : i32
    return %arg0, %c0_i32, %arg2 : i32, i32, i32
  }
  func.func @transform_3(%arg0: i32, %arg1: i32, %arg2: i32) -> (i32, i32, i32) {
    %c0_i32 = arith.constant 0 : i32
    %c0_i32_0 = arith.constant 0 : i32
    return %arg0, %c0_i32, %arg1 : i32, i32, i32
  }
}

</mosaic_0001>

<llo_original>
// kernel: tpu_custom_call.1
$region0: #{tpu_custom_call.1}
  #allocation0 [shape = 'u32[]', space=smem, size = 0x4, offset = 0x4, fixed_abs, tag = 'smem constant byte address 0x4 - core index']
  #allocation1 [shape = 'u32[144,128]{1,0:T(1,128)}', space=vmem, size = 0x12000, scoped, tag = 'internal scratch']
  #allocation2 [shape = 'f32[1,128]{1,0:T(1,128)}', space=vmem, size = 0x200, scoped, tag = 'scratch operand']
  #allocation3 [shape = 'f32[1,128]{1,0:T(1,128)}', space=vmem, size = 0x200, scoped, tag = 'scratch operand']
  %s0 = inlined_call_operand.vmem [shape: f32[2,2,256], index: 0, kind: input, shape index: {}]
  %s1 = inlined_call_operand.vmem [shape: f32[2,256,2], index: 1, kind: input, shape index: {}]
  %s2 = inlined_call_operand.vmem [shape: f32[2,4,256], index: 2, kind: input, shape index: {}]
  %s3 = inlined_call_operand.hbm [shape: f32[2,4,256], index: 3, kind: output, shape index: {}]
  %s4 = sld [smem:[#allocation0]]
  $region53: #{tpu_custom_call.1} parent=0
    _
  %s6 = ssub.s32 1, %s4
  %s7 = scalar_select 0, %s6, %s4
  $region1: #{tpu_custom_call.1} parent=0
    #allocation4 [shape = 'u8[4096]{0}', space=vmem, size = 0x1000, scoped, tag = 'output window, operand 0']
    #allocation5 [shape = 's32[2]{0}', space=sflag, size = 0x8, scoped, tag = 'scoped memory for tpu_custom_call.1']
    %8 = vsyncpa [#allocation5], 0
    %s9 = scalar_lea.sflag [#allocation5], 1
    %10 = vsyncpa %s9, 0
    loop: start=0, step=1, limit=10
    $region2: #{tpu_custom_call.1} parent=1 // loop_pre_header
      _
    $region3: #{tpu_custom_call.1} parent=1 // loop_header
      %s12 = sphi 0, %s16
      %p13 = scmp.ge.s32.totalorder %s12, 10
      %s19 = sphi 0, %s38
      %s20 = sphi 0, %s34
      %s21 = sphi 0, %s30
      %s22 = sphi 0, %s19
      %s23 = sphi 0, %s20
      %s24 = sphi 0, %s21
      %s25 = sphi 0, %s22
      %s26 = sphi 0, %s23
      %s27 = sphi 0, %s24
      %s43 = sphi 0, %s45
      %s46 = sphi 0, %s43
      %s47 = sphi 0, %s46
      %s63 = sphi 0, %s47
      %s71 = sphi 0, %s73
      %s74 = sphi 0, %s71
      %s75 = sphi 0, %s74
      %s91 = sphi 0, %s75
      %s99 = sphi 0, %s101
      %s102 = sphi 0, %s99
      %s103 = sphi 0, %s102
      %s119 = sphi 0, %s103
      %s127 = sphi 0, %s129
      %s130 = sphi 0, %s127
      %s131 = sphi 0, %s130
      %s147 = sphi 0, %s131
    $region4: #{tpu_custom_call.1} parent=1 // loop_header_branch
      %15 = sbr.rel (%p13) target = $region8
    $region5: #{tpu_custom_call.1} parent=1 // loop_body
      %s17 = ssub.s32 %s12, 1
      %s18 = ssub.s32 %s12, 2
      %s28 = sadd.s32 1, %s21
      %p29 = scmp.ge.s32.totalorder %s28, 2
      %s30 = scalar_select %p29, 0, %s28
      %s31 = sadd.s32 1, %s20
      %s32 = scalar_select %p29, %s31, %s20
      %p33 = scmp.ge.s32.totalorder %s32, 2
      %s34 = scalar_select %p33, 0, %s32
      %s35 = sadd.s32 1, %s19
      %s36 = scalar_select %p33, %s35, %s19
      %p37 = scmp.ge.s32.totalorder %s36, 2
      %s38 = scalar_select %p37, 0, %s36
      %s39 = ssub.s32 %s19, %s38
      %s40 = ssub.s32 %s20, %s34
      %s41 = sor.u32 %s39, %s40
      %p42 = scmp.eq.s32.totalorder %s41, 0
      %s44 = sadd.s32 %s43, 1
      %s45 = scalar_select %p42, %s43, %s44
      %p48 = pneg %p42
      %p49 = scmp.eq.s32.totalorder %s12, 7
      %p50 = por %p48, %p49
      %p51 = scmp.ne.s32.totalorder %s43, %s46
      %p52 = scmp.eq.s32.totalorder %s12, 0
      %p53 = por %p51, %p52
      %p54 = scmp.ne.s32.totalorder %s43, %s46
      %p55 = scmp.eq.s32.totalorder %s17, 7
      %p56 = por %p54, %p55
      %p57 = scmp.ne.s32.totalorder %s46, %s47
      %p58 = scmp.eq.s32.totalorder %s17, 0
      %p59 = por %p57, %p58
      %p60 = scmp.ne.s32.totalorder %s46, %s47
      %p61 = scmp.eq.s32.totalorder %s18, 7
      %p62 = por %p60, %p61
      %p64 = scmp.ne.s32.totalorder %s47, %s63
      %p65 = scmp.eq.s32.totalorder %s18, 0
      %p66 = por %p64, %p65
      %s67 = ssub.s32 %s19, %s38
      %s68 = ssub.s32 %s21, %s30
      %s69 = sor.u32 %s67, %s68
      %p70 = scmp.eq.s32.totalorder %s69, 0
      %s72 = sadd.s32 %s71, 1
      %s73 = scalar_select %p70, %s71, %s72
      %p76 = pneg %p70
      %p77 = scmp.eq.s32.totalorder %s12, 7
      %p78 = por %p76, %p77
      %p79 = scmp.ne.s32.totalorder %s71, %s74
      %p80 = scmp.eq.s32.totalorder %s12, 0
      %p81 = por %p79, %p80
      %p82 = scmp.ne.s32.totalorder %s71, %s74
      %p83 = scmp.eq.s32.totalorder %s17, 7
      %p84 = por %p82, %p83
      %p85 = scmp.ne.s32.totalorder %s74, %s75
      %p86 = scmp.eq.s32.totalorder %s17, 0
      %p87 = por %p85, %p86
      %p88 = scmp.ne.s32.totalorder %s74, %s75
      %p89 = scmp.eq.s32.totalorder %s18, 7
      %p90 = por %p88, %p89
      %p92 = scmp.ne.s32.totalorder %s75, %s91
      %p93 = scmp.eq.s32.totalorder %s18, 0
      %p94 = por %p92, %p93
      %s95 = ssub.s32 %s19, %s38
      %s96 = ssub.s32 %s21, %s30
      %s97 = sor.u32 %s95, %s96
      %p98 = scmp.eq.s32.totalorder %s97, 0
      %s100 = sadd.s32 %s99, 1
      %s101 = scalar_select %p98, %s99, %s100
      %p104 = pneg %p98
      %p105 = scmp.eq.s32.totalorder %s12, 7
      %p106 = por %p104, %p105
      %p107 = scmp.ne.s32.totalorder %s99, %s102
      %p108 = scmp.eq.s32.totalorder %s12, 0
      %p109 = por %p107, %p108
      %p110 = scmp.ne.s32.totalorder %s99, %s102
      %p111 = scmp.eq.s32.totalorder %s17, 7
      %p112 = por %p110, %p111
      %p113 = scmp.ne.s32.totalorder %s102, %s103
      %p114 = scmp.eq.s32.totalorder %s17, 0
      %p115 = por %p113, %p114
      %p116 = scmp.ne.s32.totalorder %s102, %s103
      %p117 = scmp.eq.s32.totalorder %s18, 7
      %p118 = por %p116, %p117
      %p120 = scmp.ne.s32.totalorder %s103, %s119
      %p121 = scmp.eq.s32.totalorder %s18, 0
      %p122 = por %p120, %p121
      %s123 = ssub.s32 %s19, %s38
      %s124 = ssub.s32 %s20, %s34
      %s125 = sor.u32 %s123, %s124
      %p126 = scmp.eq.s32.totalorder %s125, 0
      %s128 = sadd.s32 %s127, 1
      %s129 = scalar_select %p126, %s127, %s128
      %p132 = pneg %p126
      %p133 = scmp.eq.s32.totalorder %s12, 7
      %p134 = por %p132, %p133
      %p135 = scmp.ne.s32.totalorder %s127, %s130
      %p136 = scmp.eq.s32.totalorder %s12, 0
      %p137 = por %p135, %p136
      %p138 = scmp.ne.s32.totalorder %s127, %s130
      %p139 = scmp.eq.s32.totalorder %s17, 7
      %p140 = por %p138, %p139
      %p141 = scmp.ne.s32.totalorder %s130, %s131
      %p142 = scmp.eq.s32.totalorder %s17, 0
      %p143 = por %p141, %p142
      %p144 = scmp.ne.s32.totalorder %s130, %s131
      %p145 = scmp.eq.s32.totalorder %s18, 7
      %p146 = por %p144, %p145
      %p148 = scmp.ne.s32.totalorder %s131, %s147
      %p149 = scmp.eq.s32.totalorder %s18, 0
      %p150 = por %p148, %p149
      %p151 = scmp.le.s32.totalorder 1, %s12
      %p152 = scmp.lt.s32.totalorder %s12, 9
      %p153 = pnand %p151, %p152
      %p154 = pneg %p153
      // Predicated region
      $region9: #{tpu_custom_call.1} parent=5 // pred_check
        _
      $region10: #{tpu_custom_call.1} parent=5 // pred_check_branch
        %156 = sbr.rel (%p153) target = $region12
      $region11: #{tpu_custom_call.1} parent=5 // pred_region
        %s157 = ssub.s32 %s12, 1
      $region12: #{tpu_custom_call.1} parent=5 // pred_fallthru
        _
      %p158 = scmp.lt.s32.totalorder %s12, 8
      // Predicated region
      $region13: #{tpu_custom_call.1} parent=5 // pred_check
        %p159 = pneg %p158
      $region14: #{tpu_custom_call.1} parent=5 // pred_check_branch
        %161 = sbr.rel (%p159) target = $region16
      $region15: #{tpu_custom_call.1} parent=5 // pred_region
        // Predicated region
        $region17: #{tpu_custom_call.1} parent=15 // pred_check
          %p162 = pneg %p53
        $region18: #{tpu_custom_call.1} parent=15 // pred_check_branch
          %164 = sbr.rel (%p162) target = $region20
        $region19: #{tpu_custom_call.1} parent=15 // pred_region
          %p165 = scmp.lt.s32.totalorder %s19, 1
          %s166 = scalar_select %p165, %s19, 1
          %p167 = scmp.lt.s32.totalorder %s20, 1
          %s168 = scalar_select %p167, %s20, 1
          %s169 = smul.addr %s166, 2
          %s170 = sadd.s32 %s168, %s169
          %s171 = smul.addr %s170, 2
          %s172 = scalar_lea.vmem %s0, %s171
        $region20: #{tpu_custom_call.1} parent=15 // pred_fallthru
          _
        // Predicated region
        $region21: #{tpu_custom_call.1} parent=15 // pred_check
          %p173 = pneg %p81
        $region22: #{tpu_custom_call.1} parent=15 // pred_check_branch
          %175 = sbr.rel (%p173) target = $region24
        $region23: #{tpu_custom_call.1} parent=15 // pred_region
          %s176 = smul.u32 16, %s21
          %p177 = scmp.lt.s32.totalorder %s19, 1
          %s178 = scalar_select %p177, %s19, 1
          %p179 = scmp.lt.s32.totalorder %s176, 31
          %s180 = scalar_select %p179, %s176, 31
          %s181 = smul.addr %s178, 32
          %s182 = sadd.s32 %s180, %s181
          %s183 = smul.addr %s182, 8
          %s184 = scalar_lea.vmem %s1, %s183
          %s185 = smul.u32 16, %s21
        $region24: #{tpu_custom_call.1} parent=15 // pred_fallthru
          _
        // Predicated region
        $region25: #{tpu_custom_call.1} parent=15 // pred_check
          %p186 = pneg %p109
        $region26: #{tpu_custom_call.1} parent=15 // pred_check_branch
          %188 = sbr.rel (%p186) target = $region28
        $region27: #{tpu_custom_call.1} parent=15 // pred_region
          %p189 = scmp.lt.s32.totalorder %s19, 1
          %s190 = scalar_select %p189, %s19, 1
          %p191 = scmp.lt.s32.totalorder %s21, 1
          %s192 = scalar_select %p191, %s21, 1
          %s193 = smul.addr %s190, 2
          %s194 = sadd.s32 %s192, %s193
          %s195 = smul.addr %s194, 4
          %s196 = scalar_lea.vmem %s2, %s195
        $region28: #{tpu_custom_call.1} parent=15 // pred_fallthru
          _
      $region16: #{tpu_custom_call.1} parent=5 // pred_fallthru
        _
      %p197 = scmp.le.s32.totalorder 1, %s12
      %p198 = scmp.lt.s32.totalorder %s12, 9
      %p199 = pnand %p197, %p198
      %p200 = pneg %p199
      // Predicated region
      $region29: #{tpu_custom_call.1} parent=5 // pred_check
        _
      $region30: #{tpu_custom_call.1} parent=5 // pred_check_branch
        %202 = sbr.rel (%p199) target = $region32
      $region31: #{tpu_custom_call.1} parent=5 // pred_region
        %s203 = ssub.s32 %s12, 1
        %p204 = scmp.lt.s32.totalorder %s22, 1
        %s205 = scalar_select %p204, %s22, 1
        %p206 = scmp.lt.s32.totalorder %s23, 1
        %s207 = scalar_select %p206, %s23, 1
        %s208 = smul.addr %s205, 2
        %s209 = sadd.s32 %s207, %s208
        %s210 = smul.addr %s209, 2
        %s211 = scalar_lea.vmem %s0, %s210
        %p212 = pneg %p59
        %p213 = pneg %p56
        %s214 = smul.u32 16, %s24
        %p215 = scmp.lt.s32.totalorder %s22, 1
        %s216 = scalar_select %p215, %s22, 1
        %p217 = scmp.lt.s32.totalorder %s214, 31
        %s218 = scalar_select %p217, %s214, 31
        %s219 = smul.addr %s216, 32
        %s220 = sadd.s32 %s218, %s219
        %s221 = smul.addr %s220, 8
        %s222 = scalar_lea.vmem %s1, %s221
        %p223 = pneg %p87
        %p224 = pneg %p84
        %p225 = scmp.lt.s32.totalorder %s22, 1
        %s226 = scalar_select %p225, %s22, 1
        %p227 = scmp.lt.s32.totalorder %s24, 1
        %s228 = scalar_select %p227, %s24, 1
        %s229 = smul.addr %s226, 2
        %s230 = sadd.s32 %s228, %s229
        %s231 = smul.addr %s230, 4
        %s232 = scalar_lea.vmem %s2, %s231
        %p233 = pneg %p115
        %p234 = pneg %p112
        %p235 = pneg %p143
        %p236 = pneg %p140
        %s237 = sand.u32 %s130, 1
        %s238 = scalar_lea.sflag [#allocation5], %s237
        %s239 = sand.u32 %s130, 1
        %s240 = smul.addr %s239, 4
        %s241 = scalar_lea.vmem [#allocation4], %s240
        %p242 = scmp.lt.s32.totalorder %s22, 1
        %s243 = scalar_select %p242, %s22, 1
        %p244 = scmp.lt.s32.totalorder %s23, 1
        %s245 = scalar_select %p244, %s23, 1
        %s246 = smul.addr %s243, 2
        %s247 = sadd.s32 %s245, %s246
        %s248 = smul.addr %s247, 2
        %s249 = scalar_lea.vmem %s0, %s248
        %s250 = smul.u32 16, %s24
        %p251 = scmp.lt.s32.totalorder %s22, 1
        %s252 = scalar_select %p251, %s22, 1
        %p253 = scmp.lt.s32.totalorder %s250, 31
        %s254 = scalar_select %p253, %s250, 31
        %s255 = smul.addr %s252, 32
        %s256 = sadd.s32 %s254, %s255
        %s257 = smul.addr %s256, 8
        %s258 = scalar_lea.vmem %s1, %s257
        %s259 = smul.u32 16, %s24
        %p260 = scmp.lt.s32.totalorder %s22, 1
        %s261 = scalar_select %p260, %s22, 1
        %p262 = scmp.lt.s32.totalorder %s24, 1
        %s263 = scalar_select %p262, %s24, 1
        %s264 = smul.addr %s261, 2
        %s265 = sadd.s32 %s263, %s264
        %s266 = smul.addr %s265, 4
        %s267 = scalar_lea.vmem %s2, %s266
        %p269 = scmp.eq.s32.totalorder %s24, 0
        // Predicated region
        $region33: #{tpu_custom_call.1} parent=31 // pred_check
          %p270 = pneg %p269
        $region34: #{tpu_custom_call.1} parent=31 // pred_check_branch
          %272 = sbr.rel (%p270) target = $region36
        $region35: #{tpu_custom_call.1} parent=31 // pred_region
          %273 = vst [vmem:[#allocation2] sm:$0x1] -inf
          %274 = vst [vmem:[#allocation3] sm:$0x1] 0.0
          %275 = vst [vmem:[%s241] sm:$0xf] 0.0
        $region36: #{tpu_custom_call.1} parent=31 // pred_fallthru
          _
        %v276 = vld [vmem:[%s249] sm:$0x3]
        %v277 = vld [vmem:[%s258] sm:$0xff]
        %v278 = vld [vmem:[%s258 + $0x8] sm:$0xff]
        %v279 = vld [vmem:[%s258 + $0x10] sm:$0xff]
        %v280 = vld [vmem:[%s258 + $0x18] sm:$0xff]
        %v281 = vld [vmem:[%s258 + $0x20] sm:$0xff]
        %v282 = vld [vmem:[%s258 + $0x28] sm:$0xff]
        %v283 = vld [vmem:[%s258 + $0x30] sm:$0xff]
        %v284 = vld [vmem:[%s258 + $0x38] sm:$0xff]
        %v285 = vld [vmem:[%s258 + $0x40] sm:$0xff]
        %v286 = vld [vmem:[%s258 + $0x48] sm:$0xff]
        %v287 = vld [vmem:[%s258 + $0x50] sm:$0xff]
        %v288 = vld [vmem:[%s258 + $0x58] sm:$0xff]
        %v289 = vld [vmem:[%s258 + $0x60] sm:$0xff]
        %v290 = vld [vmem:[%s258 + $0x68] sm:$0xff]
        %v291 = vld [vmem:[%s258 + $0x70] sm:$0xff]
        %v292 = vld [vmem:[%s258 + $0x78] sm:$0xff]
        %v293 = vld [vmem:[%s267] sm:$0xf]
        %v294 = vpack.c.bf16 %v276, %v276
        %v295 = vpack.c.bf16 %v278, %v277
        %v296 = vpack.c.bf16 %v280, %v279
        %v297 = vpack.c.bf16 %v282, %v281
        %v298 = vpack.c.bf16 %v284, %v283
        %v299 = vpack.c.bf16 %v286, %v285
        %v300 = vpack.c.bf16 %v288, %v287
        %v301 = vpack.c.bf16 %v290, %v289
        %v302 = vpack.c.bf16 %v292, %v291
        %vm303 = vcmask 15360
        %v305 = vsel %vm303, %v295, 0
        %v308 = vsel %vm303, %v296, 0
        %v311 = vsel %vm303, %v297, 0
        %v314 = vsel %vm303, %v298, 0
        %v317 = vsel %vm303, %v299, 0
        %v320 = vsel %vm303, %v300, 0
        %v323 = vsel %vm303, %v301, 0
        %v326 = vsel %vm303, %v302, 0
        %vm328 = vcmask 1040384
        %v330 = vsel %vm328, %v294, 0
        %332 = vmatprep.subr.bf16.mxu0 0
        %333 = vmatpush1.bf16.msra.mxu0 0
        %334 = vmatprep.subr.bf16.mxu0 0
        %335 = vmatpush1.bf16.msra.mxu0 0
        %336 = vmatprep.subr.bf16.mxu0 0
        %337 = vmatpush1.bf16.msra.mxu0 0
        %338 = vmatprep.subr.bf16.mxu0 0
        %339 = vmatpush1.bf16.msra.mxu0 0
        %340 = vmatprep.subr.bf16.mxu0 0
        %341 = vmatpush1.bf16.msra.mxu0 0
        %342 = vmatprep.subr.bf16.mxu0 0
        %343 = vmatpush1.bf16.msra.mxu0 0
        %344 = vmatprep.subr.bf16.mxu0 0
        %345 = vmatpush1.bf16.msra.mxu0 0
        %346 = vmatprep.subr.bf16.mxu0 0
        %347 = vmatpush1.bf16.msra.mxu0 %v330
        %348 = vmatprep.subr.bf16.mxu0 0
        %349 = vmatpush2.bf16.msra.mxu0 0
        %350 = vmatprep.subr.bf16.mxu0 0
        %351 = vmatpush2.bf16.msra.mxu0 0
        %352 = vmatprep.subr.bf16.mxu0 0
        %353 = vmatpush2.bf16.msra.mxu0 0
        %354 = vmatprep.subr.bf16.mxu0 0
        %355 = vmatpush2.bf16.msra.mxu0 0
        %356 = vmatprep.subr.bf16.mxu0 0
        %357 = vmatpush2.bf16.msra.mxu0 0
        %358 = vmatprep.subr.bf16.mxu0 0
        %359 = vmatpush2.bf16.msra.mxu0 0
        %360 = vmatprep.subr.bf16.mxu0 0
        %361 = vmatpush2.bf16.msra.mxu0 0
        %362 = vmatprep.subr.bf16.mxu0 0
        %363 = vmatpush2.bf16.msra.mxu0 0
        %364 = vmatprep.mubr.bf16.mxu0 0
        %365 = vmatmul.mubr.bf16.gmra.mxu0 %v305
        %v366 = vpop.f32.mrf.mxu0
        %v367 = vadd.f32 0.0, %v366
        %v368 = vpop.f32.mrf.mxu0
        %v369 = vpop.f32.mrf.mxu0
        %v370 = vadd.f32 0.0, %v369
        %v371 = vpop.f32.mrf.mxu0
        %372 = vmatprep.mubr.bf16.mxu0 0
        %373 = vmatmul.mubr.bf16.gmra.mxu0 %v308
        %v374 = vpop.f32.mrf.mxu0
        %v375 = vadd.f32 0.0, %v374
        %v376 = vpop.f32.mrf.mxu0
        %v377 = vpop.f32.mrf.mxu0
        %v378 = vadd.f32 0.0, %v377
        %v379 = vpop.f32.mrf.mxu0
        %380 = vmatprep.mubr.bf16.mxu0 0
        %381 = vmatmul.mubr.bf16.gmra.mxu0 %v311
        %v382 = vpop.f32.mrf.mxu0
        %v383 = vadd.f32 0.0, %v382
        %v384 = vpop.f32.mrf.mxu0
        %v385 = vpop.f32.mrf.mxu0
        %v386 = vadd.f32 0.0, %v385
        %v387 = vpop.f32.mrf.mxu0
        %388 = vmatprep.mubr.bf16.mxu0 0
        %389 = vmatmul.mubr.bf16.gmra.mxu0 %v314
        %v390 = vpop.f32.mrf.mxu0
        %v391 = vadd.f32 0.0, %v390
        %v392 = vpop.f32.mrf.mxu0
        %v393 = vpop.f32.mrf.mxu0
        %v394 = vadd.f32 0.0, %v393
        %v395 = vpop.f32.mrf.mxu0
        %396 = vmatprep.mubr.bf16.mxu0 0
        %397 = vmatmul.mubr.bf16.gmra.mxu0 %v317
        %v398 = vpop.f32.mrf.mxu0
        %v399 = vadd.f32 0.0, %v398
        %v400 = vpop.f32.mrf.mxu0
        %v401 = vpop.f32.mrf.mxu0
        %v402 = vadd.f32 0.0, %v401
        %v403 = vpop.f32.mrf.mxu0
        %404 = vmatprep.mubr.bf16.mxu0 0
        %405 = vmatmul.mubr.bf16.gmra.mxu0 %v320
        %v406 = vpop.f32.mrf.mxu0
        %v407 = vadd.f32 0.0, %v406
        %v408 = vpop.f32.mrf.mxu0
        %v409 = vpop.f32.mrf.mxu0
        %v410 = vadd.f32 0.0, %v409
        %v411 = vpop.f32.mrf.mxu0
        %412 = vmatprep.mubr.bf16.mxu0 0
        %413 = vmatmul.mubr.bf16.gmra.mxu0 %v323
        %v414 = vpop.f32.mrf.mxu0
        %v415 = vadd.f32 0.0, %v414
        %v416 = vpop.f32.mrf.mxu0
        %v417 = vpop.f32.mrf.mxu0
        %v418 = vadd.f32 0.0, %v417
        %v419 = vpop.f32.mrf.mxu0
        %420 = vmatprep.mubr.bf16.mxu0 0
        %421 = vmatmul.mubr.bf16.gmra.mxu0 %v326
        %v422 = vpop.f32.mrf.mxu0
        %v423 = vadd.f32 0.0, %v422
        %v424 = vpop.f32.mrf.mxu0
        %v425 = vpop.f32.mrf.mxu0
        %v426 = vadd.f32 0.0, %v425
        %v427 = vpop.f32.mrf.mxu0
        %428 = vdwg.mxu0
        %v429 = vld [vmem:[#allocation2] sm:$0x1]
        %v430 = vmax.f32 %v367, %v383
        %v431 = vmax.f32 %v370, %v386
        %v432 = vmax.f32 %v375, %v391
        %v433 = vmax.f32 %v378, %v394
        %v434 = vmax.f32 %v430, %v399
        %v435 = vmax.f32 %v431, %v402
        %v436 = vmax.f32 %v432, %v407
        %v437 = vmax.f32 %v433, %v410
        %v438 = vmax.f32 %v434, %v415
        %v439 = vmax.f32 %v435, %v418
        %v440 = vmax.f32 %v436, %v423
        %v441 = vmax.f32 %v437, %v426
        %v442 = vmax.f32 %v438, %v439
        %v443 = vmax.f32 %v440, %v441
        %v444 = vmax.f32 %v442, %v443
        %v445 = vrot.slane %v444, 4
        %v446 = vmax.f32 %v444, %v445
        %v447 = vrot.slane %v446, 2
        %v448 = vmax.f32 %v446, %v447
        %v449 = vrot.slane %v448, 1
        %v450 = vmax.f32 %v448, %v449
        %v451 = vmax.f32 %v429, %v450
        %v452 = vsub.f32 %v429, %v451
        %v453 = vmul.f32 %v452, 1.442695
        %v454 = vpow.pop %v453
        %v456 = vlaneseq
        %v457 = vshrl.u32 %v456, 7
        %v458 = vsub.s32 0, %v457
        %v459 = vrot.slane %v451, %v458
        %v461 = vsub.f32 %v367, %v459
        %v462 = vsub.f32 %v370, %v459
        %v463 = vsub.f32 %v375, %v459
        %v464 = vsub.f32 %v378, %v459
        %v465 = vsub.f32 %v383, %v459
        %v466 = vsub.f32 %v386, %v459
        %v467 = vsub.f32 %v391, %v459
        %v468 = vsub.f32 %v394, %v459
        %v469 = vsub.f32 %v399, %v459
        %v470 = vsub.f32 %v402, %v459
        %v471 = vsub.f32 %v407, %v459
        %v472 = vsub.f32 %v410, %v459
        %v473 = vsub.f32 %v415, %v459
        %v474 = vsub.f32 %v418, %v459
        %v475 = vsub.f32 %v423, %v459
        %v476 = vsub.f32 %v426, %v459
        %v477 = vmul.f32 %v461, 1.442695
        %v478 = vpow.pop %v477
        %v479 = vmul.f32 %v462, 1.442695
        %v480 = vpow.pop %v479
        %v481 = vmul.f32 %v463, 1.442695
        %v482 = vpow.pop %v481
        %v483 = vmul.f32 %v464, 1.442695
        %v484 = vpow.pop %v483
        %v485 = vmul.f32 %v465, 1.442695
        %v486 = vpow.pop %v485
        %v487 = vmul.f32 %v466, 1.442695
        %v488 = vpow.pop %v487
        %v489 = vmul.f32 %v467, 1.442695
        %v490 = vpow.pop %v489
        %v491 = vmul.f32 %v468, 1.442695
        %v492 = vpow.pop %v491
        %v493 = vmul.f32 %v469, 1.442695
        %v494 = vpow.pop %v493
        %v495 = vmul.f32 %v470, 1.442695
        %v496 = vpow.pop %v495
        %v497 = vmul.f32 %v471, 1.442695
        %v498 = vpow.pop %v497
        %v499 = vmul.f32 %v472, 1.442695
        %v500 = vpow.pop %v499
        %v501 = vmul.f32 %v473, 1.442695
        %v502 = vpow.pop %v501
        %v503 = vmul.f32 %v474, 1.442695
        %v504 = vpow.pop %v503
        %v505 = vmul.f32 %v475, 1.442695
        %v506 = vpow.pop %v505
        %v507 = vmul.f32 %v476, 1.442695
        %v508 = vpow.pop %v507
        %v509 = vld [vmem:[#allocation3] sm:$0x1]
        %v510 = vmul.f32 %v454, %v509
        %v511 = vadd.f32 %v478, %v480
        %v512 = vadd.f32 %v511, %v482
        %v513 = vadd.f32 %v512, %v484
        %v514 = vadd.f32 %v513, %v486
        %v515 = vadd.f32 %v514, %v488
        %v516 = vadd.f32 %v515, %v490
        %v517 = vadd.f32 %v516, %v492
        %v518 = vadd.f32 %v517, %v494
        %v519 = vadd.f32 %v518, %v496
        %v520 = vadd.f32 %v519, %v498
        %v521 = vadd.f32 %v520, %v500
        %v522 = vadd.f32 %v521, %v502
        %v523 = vadd.f32 %v522, %v504
        %v524 = vadd.f32 %v523, %v506
        %v525 = vadd.f32 %v524, %v508
        %v526 = vrot.slane %v525, 4
        %v527 = vadd.f32 %v525, %v526
        %v528 = vrot.slane %v527, 2
        %v529 = vadd.f32 %v527, %v528
        %v530 = vrot.slane %v529, 1
        %v531 = vadd.f32 %v529, %v530
        %v532 = vadd.f32 %v510, %v531
        %533 = vst [vmem:[#allocation3] sm:$0x1] %v532
        %534 = vst [vmem:[#allocation2] sm:$0x1] %v451
        %v535 = vpack.c.bf16 %v293, %v293
        %v536 = vpack.c.bf16 %v480, %v478
        %v537 = vpack.c.bf16 %v484, %v482
        %v538 = vpack.c.bf16 %v488, %v486
        %v539 = vpack.c.bf16 %v492, %v490
        %v540 = vpack.c.bf16 %v496, %v494
        %v541 = vpack.c.bf16 %v500, %v498
        %v542 = vpack.c.bf16 %v504, %v502
        %v543 = vpack.c.bf16 %v508, %v506
        %544 = vmatprep.subr.bf16.mxu0 0
        %545 = vmatpush1.bf16.msra.mxu0 %v543
        %546 = vmatprep.subr.bf16.mxu0 0
        %547 = vmatpush1.bf16.msra.mxu0 %v542
        %548 = vmatprep.subr.bf16.mxu0 0
        %549 = vmatpush1.bf16.msra.mxu0 %v541
        %550 = vmatprep.subr.bf16.mxu0 0
        %551 = vmatpush1.bf16.msra.mxu0 %v540
        %552 = vmatprep.subr.bf16.mxu0 0
        %553 = vmatpush1.bf16.msra.mxu0 %v539
        %554 = vmatprep.subr.bf16.mxu0 0
        %555 = vmatpush1.bf16.msra.mxu0 %v538
        %556 = vmatprep.subr.bf16.mxu0 0
        %557 = vmatpush1.bf16.msra.mxu0 %v537
        %558 = vmatprep.subr.bf16.mxu0 0
        %559 = vmatpush1.bf16.msra.mxu0 %v536
        %560 = vmatprep.subr.bf16.mxu0 0
        %561 = vmatpush2.bf16.msra.mxu0 0
        %562 = vmatprep.subr.bf16.mxu0 0
        %563 = vmatpush2.bf16.msra.mxu0 0
        %564 = vmatprep.subr.bf16.mxu0 0
        %565 = vmatpush2.bf16.msra.mxu0 0
        %566 = vmatprep.subr.bf16.mxu0 0
        %567 = vmatpush2.bf16.msra.mxu0 0
        %568 = vmatprep.subr.bf16.mxu0 0
        %569 = vmatpush2.bf16.msra.mxu0 0
        %570 = vmatprep.subr.bf16.mxu0 0
        %571 = vmatpush2.bf16.msra.mxu0 0
        %572 = vmatprep.subr.bf16.mxu0 0
        %573 = vmatpush2.bf16.msra.mxu0 0
        %574 = vmatprep.subr.bf16.mxu0 0
        %575 = vmatpush2.bf16.msra.mxu0 0
        %576 = vmatprep.mubr.bf16.mxu0 0
        %577 = vmatmul.mubr.bf16.gmra.mxu0 %v535
        %v578 = vpop.f32.mrf.mxu0
        %v579 = vadd.f32 0.0, %v578
        %v580 = vpop.f32.mrf.mxu0
        %v581 = vpop.f32.mrf.mxu0
        %v582 = vpop.f32.mrf.mxu0
        %583 = vdwg.mxu0
        %v584 = vld [vmem:[%s241] sm:$0xf]
        %v586 = vlaneseq
        %v587 = vshrl.u32 %v586, 7
        %v588 = vsub.s32 0, %v587
        %v589 = vrot.slane %v454, %v588
        %v591 = vmul.f32 %v589, %v584
        %v592 = vadd.f32 %v591, %v579
        %593 = vst [vmem:[%s241] sm:$0xf] %v592
        %p594 = scmp.eq.s32.totalorder %s24, 1
        // Predicated region
        $region37: #{tpu_custom_call.1} parent=31 // pred_check
          %p595 = pneg %p594
        $region38: #{tpu_custom_call.1} parent=31 // pred_check_branch
          %597 = sbr.rel (%p595) target = $region40
        $region39: #{tpu_custom_call.1} parent=31 // pred_region
          %v598 = vld [vmem:[#allocation3] sm:$0x1]
          %v599 = vrcp.pop %v598
          %v600 = vmul.f32 %v598, %v599
          %v601 = vsub.f32 2.0, %v600
          %v602 = vmul.f32 %v599, %v601
          %v603 = vld [vmem:[%s241] sm:$0xf]
          %v605 = vlaneseq
          %v606 = vshrl.u32 %v605, 7
          %v607 = vsub.s32 0, %v606
          %v608 = vrot.slane %v602, %v607
          %v610 = vmul.f32 %v603, %v608
          %611 = vst [vmem:[%s241] sm:$0xf] %v610
        $region40: #{tpu_custom_call.1} parent=31 // pred_fallthru
          _
        %s612 = sand.u32 %s130, 1
        %s613 = scalar_lea.sflag [#allocation5], %s612
        %s614 = sand.u32 %s130, 1
        %s615 = smul.addr %s614, 4
        %s616 = scalar_lea.vmem [#allocation4], %s615
        // Predicated region
        $region41: #{tpu_custom_call.1} parent=31 // pred_check
          %p617 = pneg %p140
        $region42: #{tpu_custom_call.1} parent=31 // pred_check_branch
          %619 = sbr.rel (%p617) target = $region44
        $region43: #{tpu_custom_call.1} parent=31 // pred_region
          %s621 = ssub.s32 64, 64
          %622 = vsyncadd %s613, %s621
          %s623 = smul.addr %s22, 2
          %s624 = sadd.s32 %s23, %s623
          %s625 = smul.addr %s624, 64
          %s626 = scalar_lea.hbm %s3, %s625
          %s628 = sshll.u32 %s616, 4
          %s629 = int_to_ptr.vmem [resolvable:$true] %s628
          %631 = dma.vmem_to_hbm [thread:$0]  %s629, 64, %s626, %s613
        $region44: #{tpu_custom_call.1} parent=31 // pred_fallthru
          _
      $region32: #{tpu_custom_call.1} parent=5 // pred_fallthru
        _
      %p632 = scmp.le.s32.totalorder 2, %s12
      // Predicated region
      $region45: #{tpu_custom_call.1} parent=5 // pred_check
        %p633 = pneg %p632
      $region46: #{tpu_custom_call.1} parent=5 // pred_check_branch
        %635 = sbr.rel (%p633) target = $region48
      $region47: #{tpu_custom_call.1} parent=5 // pred_region
        %s636 = ssub.s32 %s12, 2
        // Predicated region
        $region49: #{tpu_custom_call.1} parent=47 // pred_check
          %p637 = pneg %p146
        $region50: #{tpu_custom_call.1} parent=47 // pred_check_branch
          %639 = sbr.rel (%p637) target = $region52
        $region51: #{tpu_custom_call.1} parent=47 // pred_region
          %s640 = sand.u32 %s131, 1
          %s641 = scalar_lea.sflag [#allocation5], %s640
          %s642 = sand.u32 %s131, 1
          %s643 = smul.addr %s642, 4
          %s644 = scalar_lea.vmem [#allocation4], %s643
          %645 = dma.done %s641, 64
        $region52: #{tpu_custom_call.1} parent=47 // pred_fallthru
          _
      $region48: #{tpu_custom_call.1} parent=5 // pred_fallthru
        _
    $region6: #{tpu_custom_call.1} parent=1 // loop_footer
      %s16 = sadd.s32 1, %s12
    $region7: #{tpu_custom_call.1} parent=1 // loop_footer_branch
      %11 = sbr.rel target = $region3
    $region8: #{tpu_custom_call.1} parent=1 // loop_exit
      _
    %646 = vsyncpa [#allocation5], 1
    %s647 = scalar_lea.sflag [#allocation5], 1
    %648 = vsyncpa %s647, 1

</llo_original>
